<compile_context>
chip_gen: v5e
topology: v5e:2x2
jax: 0.10.0
libtpu: 0.0.40
codegen_flags: <defaults>
</compile_context>

<pallas_src>
import functools

import numpy as np
import jax
import jax.numpy as jnp
from jax import lax
from jax.experimental import pallas as pl
from jax.experimental.pallas import tpu as pltpu

# ----------------------------- synthetic config -----------------------------
NUM_CHANNELS = 3
PATCH_SIZE = 4
IMAGE_SIZE = 16                       # -> 4x4 = 16 patches per image
NUM_HEADS = 2
HEAD_DIM = 128                        # 128 lanes -> lane-dense per-head tiles
HIDDEN_SIZE = NUM_HEADS * HEAD_DIM    # 256
INTERMEDIATE_SIZE = 512
NUM_LAYERS = 2
ROPE_THETA = 10000.0
RMS_EPS = 1e-5
# Actual usage here is a few MiB; raise toward 64-100 MiB (v6e) once weights /
# activation tiles are production-sized.
VMEM_LIMIT_BYTES = 32 * 1024 * 1024


# ------------------------------ Pallas kernels ------------------------------
def _patch_embed_kernel(x_ref, w_ref, g_ref, o_ref, *, eps):
    """im2col patch-conv matmul fused with the ln_pre RMSNorm."""
    y = jnp.dot(x_ref[...], w_ref[...], preferred_element_type=jnp.float32)
    var = jnp.mean(y * y, axis=-1, keepdims=True)
    y = y * lax.rsqrt(var + eps) * g_ref[...].astype(jnp.float32)
    o_ref[...] = y.astype(o_ref.dtype)


def _pick_rows_per_block(m, max_rows=256):
    """Largest row tile <= max_rows that divides m and leaves >= 2 grid steps."""
    cand = max_rows
    while cand >= 16:
        if m % cand == 0 and m // cand >= 2:
            return cand
        cand //= 2
    return m


def patch_embed(patches, w_flat, ln_pre_w):
    """patches:(M, C*P*P) bf16, w_flat:(C*P*P, hidden) bf16 -> (M, hidden) bf16."""
    M, K = patches.shape
    N = w_flat.shape[1]
    rows = _pick_rows_per_block(M)
    cost = pl.CostEstimate(
        flops=int(2 * M * K * N + 8 * M * N),
        transcendentals=int(M),                       # rsqrt per row
        bytes_accessed=int(patches.size * 2 + w_flat.size * 2
                           + ln_pre_w.size * 2 + M * N * 2),
    )
    return pl.pallas_call(
        functools.partial(_patch_embed_kernel, eps=RMS_EPS),
        out_shape=jax.ShapeDtypeStruct((M, N), jnp.bfloat16),
        grid=(M // rows,),
        in_specs=[
            pl.BlockSpec((rows, K), lambda i: (i, 0)),
            pl.BlockSpec((K, N), lambda i: (0, 0)),
            pl.BlockSpec((1, N), lambda i: (0, 0)),
        ],
        out_specs=pl.BlockSpec((rows, N), lambda i: (i, 0)),
        compiler_params=pltpu.CompilerParams(
            dimension_semantics=("parallel",),
            vmem_limit_bytes=VMEM_LIMIT_BYTES,
        ),
        cost_estimate=cost,
    )(patches, w_flat, ln_pre_w)


def _encoder_layer_kernel(
    x_ref, cos_q_ref, sin_q_ref, cos_k_ref, sin_k_ref,
    attn_norm_ref, w_qkv_ref, w_o_ref,
    ffn_norm_ref, w_gate_ref, w_up_ref, w_down_ref,
    o_ref, *, num_heads, head_dim, images_per_step, pseq, eps,
):
    """One full Pixtral encoder layer for a group of images' patch rows."""
    hid = num_heads * head_dim
    G = images_per_step
    half = head_dim // 2

    def rmsnorm(v, g_ref):
        var = jnp.mean(v * v, axis=-1, keepdims=True)
        return v * lax.rsqrt(var + eps) * g_ref[...].astype(jnp.float32)

    def rope(t, cos, sin):
        # rotate_half(t) = [t[:, D/2:], t[:, :D/2]]; the rotate_half sign (and,
        # for q, the 1/sqrt(D) softmax scale) is pre-folded into cos/sin by the
        # wrapper, so here it is just an unsigned half swap.
        rot = jnp.concatenate([t[:, half:], t[:, :half]], axis=1)
        return t * cos + rot * sin

    x = x_ref[...].astype(jnp.float32)                          # (M, hid) f32

    # ---------------- attention sub-block ----------------
    h = rmsnorm(x, attn_norm_ref).astype(jnp.bfloat16)
    # Fused QKV matmul over the whole M-row group; cast to bf16 immediately to
    # keep the activation footprint small (matches the bf16 torch reference).
    qkv = jnp.dot(h, w_qkv_ref[...],
                  preferred_element_type=jnp.float32).astype(jnp.bfloat16)

    cos_q, sin_q = cos_q_ref[...], sin_q_ref[...]               # (M, D) f32
    cos_k, sin_k = cos_k_ref[...], sin_k_ref[...]
    w_o = w_o_ref[...]                                          # (hid, hid)

    attn = None
    for hd in range(num_heads):              # static unroll; 128-lane slices
        lo = hd * head_dim
        q_h = rope(qkv[:, lo:lo + head_dim], cos_q, sin_q).astype(jnp.bfloat16)
        k_h = rope(qkv[:, hid + lo:hid + lo + head_dim],
                   cos_k, sin_k).astype(jnp.bfloat16)
        v_h = qkv[:, 2 * hid + lo:2 * hid + lo + head_dim]

        # Block-diagonal attention: each image attends only within itself.
        q3 = q_h.reshape(G, pseq, head_dim)
        k3 = k_h.reshape(G, pseq, head_dim)
        v3 = v_h.reshape(G, pseq, head_dim)
        s = jnp.einsum("gqd,gkd->gqk", q3, k3,
                       preferred_element_type=jnp.float32)      # (G, pseq, pseq)
        s = s - jnp.max(s, axis=-1, keepdims=True)
        p = jnp.exp(s)
        p = p / jnp.sum(p, axis=-1, keepdims=True)
        ctx = jnp.einsum("gqk,gkd->gqd", p.astype(jnp.bfloat16), v3,
                         preferred_element_type=jnp.float32)    # (G, pseq, D)
        ctx = ctx.reshape(G * pseq, head_dim).astype(jnp.bfloat16)

        # Per-head o-projection accumulation at full M rows (no lane concat of
        # head outputs; on v7x the MRB accumulates this in place).
        contrib = jnp.dot(ctx, w_o[lo:lo + head_dim, :],
                          preferred_element_type=jnp.float32)
        attn = contrib if attn is None else attn + contrib

    x = x + attn

    # ---------------- gated MLP sub-block ----------------
    # TODO(synk): for v5e, fold the rmsnorm gains into w_qkv / w_gate / w_up
    # offline to remove one full-width f32 multiply per sub-block.
    h = rmsnorm(x, ffn_norm_ref).astype(jnp.bfloat16)
    g = jnp.dot(h, w_gate_ref[...], preferred_element_type=jnp.float32)
    u = jnp.dot(h, w_up_ref[...], preferred_element_type=jnp.float32)
    act = (g * jax.nn.sigmoid(g)) * u                           # silu(g) * u
    down = jnp.dot(act.astype(jnp.bfloat16), w_down_ref[...],
                   preferred_element_type=jnp.float32)
    x = x + down

    o_ref[...] = x.astype(o_ref.dtype)


def encoder_layer(x, cos_q, sin_q, cos_k, sin_k, lp, *, num_images, pseq,
                  images_per_step):
    """x:(T, hidden) bf16 with T = num_images * pseq -> (T, hidden) bf16."""
    T, hid = x.shape
    assert T == num_images * pseq
    assert num_images % images_per_step == 0
    block_rows = images_per_step * pseq
    grid = (num_images // images_per_step,)

    kern = functools.partial(
        _encoder_layer_kernel,
        num_heads=NUM_HEADS, head_dim=HEAD_DIM,
        images_per_step=images_per_step, pseq=pseq, eps=RMS_EPS,
    )
    row_spec = pl.BlockSpec((block_rows, hid), lambda b: (b, 0))
    rope_spec = pl.BlockSpec((block_rows, HEAD_DIM), lambda b: (b, 0))

    def full(a):
        # TODO(synk): at production dims these grid-invariant weights should be
        # N/K-tiled (3-D grid + f32 VMEM accumulator) and single-buffered
        # (pipeline_mode=pl.Buffered(1)) to fit v7x's 64 MiB VMEM; whole-weight
        # blocks are fine at the ~1.3 MiB/layer synthetic dims used here.
        return pl.BlockSpec(a.shape, lambda b: (0, 0))

    flops = (2 * T * hid * (3 * hid)                            # qkv
             + NUM_HEADS * num_images * 4 * pseq * pseq * HEAD_DIM  # attn
             + 2 * T * hid * hid                                # o-proj
             + 6 * T * hid * INTERMEDIATE_SIZE)                 # gate/up/down
    transcendentals = (NUM_HEADS * num_images * pseq * pseq     # exp
                       + T * INTERMEDIATE_SIZE                  # sigmoid
                       + 2 * T)                                 # rsqrt
    weight_bytes = sum(int(np.prod(lp[k].shape)) * 2 for k in
                       ("attn_norm_w", "w_qkv", "w_o", "ffn_norm_w",
                        "w_gate", "w_up", "w_down"))
    bytes_accessed = 2 * T * hid * 2 + 4 * T * HEAD_DIM * 4 + weight_bytes
    cost = pl.CostEstimate(flops=int(flops),
                           transcendentals=int(transcendentals),
                           bytes_accessed=int(bytes_accessed))

    return pl.pallas_call(
        kern,
        out_shape=jax.ShapeDtypeStruct((T, hid), x.dtype),
        grid=grid,
        in_specs=[
            row_spec, rope_spec, rope_spec, rope_spec, rope_spec,
            full(lp["attn_norm_w"]), full(lp["w_qkv"]), full(lp["w_o"]),
            full(lp["ffn_norm_w"]), full(lp["w_gate"]), full(lp["w_up"]),
            full(lp["w_down"]),
        ],
        out_specs=row_spec,
        compiler_params=pltpu.CompilerParams(
            dimension_semantics=("parallel",),
            vmem_limit_bytes=VMEM_LIMIT_BYTES,
        ),
        cost_estimate=cost,
    )(x, cos_q, sin_q, cos_k, sin_k,
      lp["attn_norm_w"], lp["w_qkv"], lp["w_o"],
      lp["ffn_norm_w"], lp["w_gate"], lp["w_up"], lp["w_down"])


# ------------------------------- JAX glue ------------------------------------
def position_ids_in_meshgrid(patch_hw_list, max_width):
    pos = []
    for hp, wp in patch_hw_list:
        hh, ww = np.meshgrid(np.arange(hp), np.arange(wp), indexing="ij")
        pos.append((hh * max_width + ww).reshape(-1))
    return np.concatenate(pos).astype(np.int32)


def pixtral_rope_cos_sin(position_ids, head_dim, base, max_patches_per_side):
    freqs = 1.0 / (base ** (jnp.arange(0, head_dim, 2, dtype=jnp.float32) / head_dim))
    h = jnp.arange(max_patches_per_side, dtype=jnp.float32)
    w = jnp.arange(max_patches_per_side, dtype=jnp.float32)
    freqs_h = jnp.outer(h, freqs[::2])            # (mps, head_dim//4)
    freqs_w = jnp.outer(w, freqs[1::2])           # (mps, head_dim//4)
    inv_freq = jnp.concatenate(
        [
            jnp.tile(freqs_h[:, None, :], (1, max_patches_per_side, 1)),
            jnp.tile(freqs_w[None, :, :], (max_patches_per_side, 1, 1)),
        ],
        axis=-1,
    ).reshape(-1, head_dim // 2)                  # (mps*mps, head_dim//2)
    f = inv_freq[position_ids]                    # (T, head_dim//2)
    emb = jnp.concatenate([f, f], axis=-1)        # (T, head_dim)
    return jnp.cos(emb), jnp.sin(emb)


def im2col_patches(pixel_values):
    """NCHW -> (B*Hp*Wp, C*P*P) bf16, channel-major per patch (Conv2d order)."""
    B, C, H, W = pixel_values.shape
    P = PATCH_SIZE
    Hp, Wp = H // P, W // P
    x = pixel_values.reshape(B, C, Hp, P, Wp, P)
    x = x.transpose(0, 2, 4, 1, 3, 5).reshape(B * Hp * Wp, C * P * P)
    return x.astype(jnp.bfloat16), Hp, Wp


def _pick_images_per_step(num_images, pseq, target_rows=128, min_steps=2):
    """Largest image group whose rows <= target_rows keeping >= min_steps."""
    best = 1
    for g in range(1, num_images + 1):
        if num_images % g:
            continue
        if g * pseq <= target_rows and num_images // g >= min_steps:
            best = g
    return best


def pixtral_vision_forward(pixel_values, image_sizes_np, params):
    B = pixel_values.shape[0]
    P = PATCH_SIZE

    # Patch "conv" (kernel == stride, no bias) + ln_pre fused into one kernel.
    patches, Hp, Wp = im2col_patches(pixel_values)
    y = patch_embed(patches, params["w_conv"], params["ln_pre_w"])
    y = y.reshape(B, Hp, Wp, HIDDEN_SIZE)

    patch_hw = [(int(s[0]) // P, int(s[1]) // P) for s in image_sizes_np]
    embeds = [y[b, :hp, :wp].reshape(hp * wp, HIDDEN_SIZE)
              for b, (hp, wp) in enumerate(patch_hw)]
    x = jnp.concatenate(embeds, axis=0)                      # (T, hidden) bf16

    # Attention is block-diagonal per image (seq_lens from attn_metadata).
    # All synthetic images share a patch count so a group of images is handled
    # per grid step; the group size is picked to fill the MXU rows (~128).
    pseq = patch_hw[0][0] * patch_hw[0][1]
    assert all(hp * wp == pseq for hp, wp in patch_hw)
    images_per_step = _pick_images_per_step(B, pseq)

    pos_ids = position_ids_in_meshgrid(patch_hw, max_width=IMAGE_SIZE // P)
    cos, sin = pixtral_rope_cos_sin(
        jnp.asarray(pos_ids), HEAD_DIM, ROPE_THETA, IMAGE_SIZE // P
    )
    # Fold the rotate_half +/- sign into sin, and the 1/sqrt(head_dim) softmax
    # scale into the q-side tables (RoPE is linear in cos/sin).
    sign = jnp.concatenate(
        [-jnp.ones((HEAD_DIM // 2,), jnp.float32),
         jnp.ones((HEAD_DIM // 2,), jnp.float32)]
    )
    scale = HEAD_DIM ** -0.5
    sin_k = sin * sign
    cos_k = cos
    sin_q = sin_k * scale
    cos_q = cos * scale

    for lp in params["layers"]:
        x = encoder_layer(x, cos_q, sin_q, cos_k, sin_k, lp,
                          num_images=B, pseq=pseq,
                          images_per_step=images_per_step)
    return x                                                 # (T, hidden) bf16


# ------------------------------ parameter init -------------------------------
def init_params(key):
    keys = jax.random.split(key, 1 + NUM_LAYERS)

    def nrm(k, shape, scale=0.02):
        return (scale * jax.random.normal(k, shape, dtype=jnp.float32)
                ).astype(jnp.bfloat16)

    params = {
        # torch Conv2d weight (hidden, C, P, P), stored here pre-flattened and
        # transposed to (C*P*P, hidden) so the patch conv is one MXU matmul.
        "w_conv": nrm(keys[0], (NUM_CHANNELS * PATCH_SIZE * PATCH_SIZE, HIDDEN_SIZE)),
        "ln_pre_w": jnp.ones((1, HIDDEN_SIZE), jnp.bfloat16),
        "layers": [],
    }
    for i in range(NUM_LAYERS):
        lk = jax.random.split(keys[1 + i], 5)
        params["layers"].append(
            {
                "attn_norm_w": jnp.ones((1, HIDDEN_SIZE), jnp.bfloat16),
                "ffn_norm_w": jnp.ones((1, HIDDEN_SIZE), jnp.bfloat16),
                "w_qkv": nrm(lk[0], (HIDDEN_SIZE, 3 * NUM_HEADS * HEAD_DIM)),
                "w_o": nrm(lk[1], (NUM_HEADS * HEAD_DIM, HIDDEN_SIZE)),
                "w_gate": nrm(lk[2], (HIDDEN_SIZE, INTERMEDIATE_SIZE)),
                "w_up": nrm(lk[3], (HIDDEN_SIZE, INTERMEDIATE_SIZE)),
                "w_down": nrm(lk[4], (INTERMEDIATE_SIZE, HIDDEN_SIZE)),
            }
        )
    return params


# ---------------------------------- main --------------------------------------
if __name__ == "__main__":
    key = jax.random.PRNGKey(0)
    kp, kx = jax.random.split(key)
    params = init_params(kp)

    # 32 small images x 16 patches each -> 512 tokens; with 8 images per grid
    # step the per-layer matmuls run on M=128 rows over a 4-step grid.
    B = 32
    pixel_values = jax.random.normal(
        kx, (B, NUM_CHANNELS, IMAGE_SIZE, IMAGE_SIZE), dtype=jnp.float32
    )
    image_sizes = np.array([[IMAGE_SIZE, IMAGE_SIZE]] * B, dtype=np.int32)

    out = pixtral_vision_forward(pixel_values, image_sizes, params)
    out = jax.block_until_ready(out)

    total_patches = B * (IMAGE_SIZE // PATCH_SIZE) ** 2
    assert out.shape == (total_patches, HIDDEN_SIZE), out.shape
    assert bool(jnp.all(jnp.isfinite(out.astype(jnp.float32))))
    print("KERNEL_OK")
</pallas_src>

<mosaic_0001>
module attributes {stable_mosaic.version = 11 : i64} {
  func.func @_patch_embed_kernel(%arg0: i32, %arg1: memref<256x48xbf16, #tpu.memory_space<vmem>>, %arg2: memref<48x256xbf16, #tpu.memory_space<vmem>>, %arg3: memref<1x256xbf16, #tpu.memory_space<vmem>>, %arg4: memref<256x256xbf16, #tpu.memory_space<vmem>>) attributes {dimension_semantics = [#tpu.dimension_semantics<parallel>], iteration_bounds = array<i64: 2>, scalar_prefetch = 0 : i64, scratch_operands = 0 : i64, tpu.core_type = #tpu.core_type<tc>, window_params = [{transform_indices = @transform_0, window_bounds = array<i64: 256, 48>}, {pipeline_mode = #tpu.pipeline_mode<synchronous>, transform_indices = @transform_1, window_bounds = array<i64: 48, 256>}, {pipeline_mode = #tpu.pipeline_mode<synchronous>, transform_indices = @transform_2, window_bounds = array<i64: 1, 256>}, {transform_indices = @transform_3, window_bounds = array<i64: 256, 256>}]} {
    %c0 = arith.constant 0 : index
    %c0_0 = arith.constant 0 : index
    %0 = vector.load %arg1[%c0, %c0_0] : memref<256x48xbf16, #tpu.memory_space<vmem>>, vector<256x48xbf16>
    %c0_1 = arith.constant 0 : index
    %c0_2 = arith.constant 0 : index
    %1 = vector.load %arg2[%c0_1, %c0_2] : memref<48x256xbf16, #tpu.memory_space<vmem>>, vector<48x256xbf16>
    %cst = arith.constant dense<0.000000e+00> : vector<256x256xf32>
    %2 = tpu.matmul %0, %1, %cst {dimension_numbers = #tpu.dot_dimension_numbers<[1], [0], [0], [1], [0, 0, 1, 1], [], []>} : vector<256x48xbf16>, vector<48x256xbf16>, vector<256x256xf32> -> vector<256x256xf32>
    %3 = arith.mulf %2, %2 : vector<256x256xf32>
    %cst_3 = arith.constant dense<0.000000e+00> : vector<256xf32>
    %4 = vector.multi_reduction <add>, %3, %cst_3 [1] : vector<256x256xf32> to vector<256xf32>
    %5 = vector.shape_cast %4 : vector<256xf32> to vector<256x1xf32>
    %cst_4 = arith.constant 2.560000e+02 : f32
    %6 = vector.broadcast %cst_4 : f32 to vector<256x1xf32>
    %7 = arith.divf %5, %6 : vector<256x1xf32>
    %cst_5 = arith.constant 9.99999974E-6 : f32
    %8 = vector.broadcast %cst_5 : f32 to vector<256x1xf32>
    %9 = arith.addf %7, %8 : vector<256x1xf32>
    %10 = math.rsqrt %9 : vector<256x1xf32>
    %11 = vector.broadcast %10 : vector<256x1xf32> to vector<256x256xf32>
    %12 = arith.mulf %2, %11 : vector<256x256xf32>
    %c0_6 = arith.constant 0 : index
    %c0_7 = arith.constant 0 : index
    %13 = vector.load %arg3[%c0_6, %c0_7] : memref<1x256xbf16, #tpu.memory_space<vmem>>, vector<1x256xbf16>
    %14 = arith.extf %13 : vector<1x256xbf16> to vector<1x256xf32>
    %15 = vector.broadcast %14 : vector<1x256xf32> to vector<256x256xf32>
    %16 = arith.mulf %12, %15 : vector<256x256xf32>
    %17 = arith.truncf %16 : vector<256x256xf32> to vector<256x256xbf16>
    %c0_8 = arith.constant 0 : index
    %c0_9 = arith.constant 0 : index
    %18 = vector.load %arg4[%c0_8, %c0_9] : memref<256x256xbf16, #tpu.memory_space<vmem>>, vector<256x256xbf16>
    tpu.vector_store %arg4[%c0_8, %c0_9], %17 {strides = array<i32>} : memref<256x256xbf16, #tpu.memory_space<vmem>>, vector<256x256xbf16>,
    return
  }
  func.func @transform_0(%arg0: i32) -> (i32, i32) {
    %c0_i32 = arith.constant 0 : i32
    %c0_i32_0 = arith.constant 0 : i32
    return %arg0, %c0_i32 : i32, i32
  }
  func.func @transform_1(%arg0: i32) -> (i32, i32) {
    %c0_i32 = arith.constant 0 : i32
    %c0_i32_0 = arith.constant 0 : i32
    %c0_i32_1 = arith.constant 0 : i32
    return %c0_i32, %c0_i32_0 : i32, i32
  }
  func.func @transform_2(%arg0: i32) -> (i32, i32) {
    %c0_i32 = arith.constant 0 : i32
    %c0_i32_0 = arith.constant 0 : i32
    %c0_i32_1 = arith.constant 0 : i32
    return %c0_i32, %c0_i32_0 : i32, i32
  }
  func.func @transform_3(%arg0: i32) -> (i32, i32) {
    %c0_i32 = arith.constant 0 : i32
    %c0_i32_0 = arith.constant 0 : i32
    return %arg0, %c0_i32 : i32, i32
  }
}

</mosaic_0001>

<llo_original>
// kernel: tpu_custom_call.1
$region0: #{tpu_custom_call.1}
  #allocation0 [shape = 'u32[]', space=smem, size = 0x4, offset = 0x4, fixed_abs, tag = 'smem constant byte address 0x4 - core index']
  #allocation1 [shape = 'u32[72,128]{1,0:T(1,128)}', space=vmem, size = 0x9000, scoped, tag = 'internal scratch']
  %s0 = inlined_call_operand.vmem [shape: bf16[512,48], index: 0, kind: input, shape index: {}]
  %s1 = inlined_call_operand.vmem [shape: bf16[48,256], index: 1, kind: input, shape index: {}]
  %s2 = inlined_call_operand.vmem [shape: bf16[1,256], index: 2, kind: input, shape index: {}]
  %s3 = inlined_call_operand.hbm [shape: bf16[512,256], index: 3, kind: output, shape index: {}]
  %s4 = sld [smem:[#allocation0]]
  $region45: #{tpu_custom_call.1} parent=0
    _
  %s6 = ssub.s32 1, %s4
  %s7 = scalar_select 0, %s6, %s4
  $region1: #{tpu_custom_call.1} parent=0
    #allocation2 [shape = 'u8[262144]{0}', space=vmem, size = 0x40000, scoped, tag = 'output window, operand 0']
    #allocation3 [shape = 's32[2]{0}', space=sflag, size = 0x8, scoped, tag = 'scoped memory for tpu_custom_call.1']
    %8 = vsyncpa [#allocation3], 0
    %s9 = scalar_lea.sflag [#allocation3], 1
    %10 = vsyncpa %s9, 0
    loop: start=0, step=1, limit=4
    $region2: #{tpu_custom_call.1} parent=1 // loop_pre_header
      _
    $region3: #{tpu_custom_call.1} parent=1 // loop_header
      %s12 = sphi 0, %s16
      %p13 = scmp.ge.s32.totalorder %s12, 4
      %s22 = sphi 0, %s24
      %s25 = sphi 0, %s22
      %s26 = sphi 0, %s25
      %s42 = sphi 0, %s26
      %s46 = sphi 0, %s46
      %s48 = sphi 0, %s46
      %s49 = sphi 0, %s48
      %s63 = sphi 0, %s49
      %s67 = sphi 0, %s67
      %s69 = sphi 0, %s67
      %s70 = sphi 0, %s69
      %s84 = sphi 0, %s70
      %s90 = sphi 0, %s92
      %s93 = sphi 0, %s90
      %s94 = sphi 0, %s93
      %s110 = sphi 0, %s94
    $region4: #{tpu_custom_call.1} parent=1 // loop_header_branch
      %15 = sbr.rel (%p13) target = $region8
    $region5: #{tpu_custom_call.1} parent=1 // loop_body
      %s17 = ssub.s32 %s12, 1
      %s18 = ssub.s32 %s12, 2
      %s19 = sadd.s32 %s12, 1
      %s20 = ssub.s32 %s12, %s19
      %p21 = scmp.eq.s32.totalorder %s20, 0
      %s23 = sadd.s32 %s22, 1
      %s24 = scalar_select %p21, %s22, %s23
      %p27 = pneg %p21
      %p28 = scmp.eq.s32.totalorder %s12, 1
      %p29 = por %p27, %p28
      %p30 = scmp.ne.s32.totalorder %s22, %s25
      %p31 = scmp.eq.s32.totalorder %s12, 0
      %p32 = por %p30, %p31
      %p33 = scmp.ne.s32.totalorder %s22, %s25
      %p34 = scmp.eq.s32.totalorder %s17, 1
      %p35 = por %p33, %p34
      %p36 = scmp.ne.s32.totalorder %s25, %s26
      %p37 = scmp.eq.s32.totalorder %s17, 0
      %p38 = por %p36, %p37
      %p39 = scmp.ne.s32.totalorder %s25, %s26
      %p40 = scmp.eq.s32.totalorder %s18, 1
      %p41 = por %p39, %p40
      %p43 = scmp.ne.s32.totalorder %s26, %s42
      %p44 = scmp.eq.s32.totalorder %s18, 0
      %p45 = por %p43, %p44
      %s47 = sadd.s32 %s46, 1
      %p50 = scmp.eq.s32.totalorder %s12, 1
      %p51 = scmp.ne.s32.totalorder %s46, %s48
      %p52 = scmp.eq.s32.totalorder %s12, 0
      %p53 = por %p51, %p52
      %p54 = scmp.ne.s32.totalorder %s46, %s48
      %p55 = scmp.eq.s32.totalorder %s17, 1
      %p56 = por %p54, %p55
      %p57 = scmp.ne.s32.totalorder %s48, %s49
      %p58 = scmp.eq.s32.totalorder %s17, 0
      %p59 = por %p57, %p58
      %p60 = scmp.ne.s32.totalorder %s48, %s49
      %p61 = scmp.eq.s32.totalorder %s18, 1
      %p62 = por %p60, %p61
      %p64 = scmp.ne.s32.totalorder %s49, %s63
      %p65 = scmp.eq.s32.totalorder %s18, 0
      %p66 = por %p64, %p65
      %s68 = sadd.s32 %s67, 1
      %p71 = scmp.eq.s32.totalorder %s12, 1
      %p72 = scmp.ne.s32.totalorder %s67, %s69
      %p73 = scmp.eq.s32.totalorder %s12, 0
      %p74 = por %p72, %p73
      %p75 = scmp.ne.s32.totalorder %s67, %s69
      %p76 = scmp.eq.s32.totalorder %s17, 1
      %p77 = por %p75, %p76
      %p78 = scmp.ne.s32.totalorder %s69, %s70
      %p79 = scmp.eq.s32.totalorder %s17, 0
      %p80 = por %p78, %p79
      %p81 = scmp.ne.s32.totalorder %s69, %s70
      %p82 = scmp.eq.s32.totalorder %s18, 1
      %p83 = por %p81, %p82
      %p85 = scmp.ne.s32.totalorder %s70, %s84
      %p86 = scmp.eq.s32.totalorder %s18, 0
      %p87 = por %p85, %p86
      %s88 = ssub.s32 %s12, %s19
      %p89 = scmp.eq.s32.totalorder %s88, 0
      %s91 = sadd.s32 %s90, 1
      %s92 = scalar_select %p89, %s90, %s91
      %p95 = pneg %p89
      %p96 = scmp.eq.s32.totalorder %s12, 1
      %p97 = por %p95, %p96
      %p98 = scmp.ne.s32.totalorder %s90, %s93
      %p99 = scmp.eq.s32.totalorder %s12, 0
      %p100 = por %p98, %p99
      %p101 = scmp.ne.s32.totalorder %s90, %s93
      %p102 = scmp.eq.s32.totalorder %s17, 1
      %p103 = por %p101, %p102
      %p104 = scmp.ne.s32.totalorder %s93, %s94
      %p105 = scmp.eq.s32.totalorder %s17, 0
      %p106 = por %p104, %p105
      %p107 = scmp.ne.s32.totalorder %s93, %s94
      %p108 = scmp.eq.s32.totalorder %s18, 1
      %p109 = por %p107, %p108
      %p111 = scmp.ne.s32.totalorder %s94, %s110
      %p112 = scmp.eq.s32.totalorder %s18, 0
      %p113 = por %p111, %p112
      %p114 = scmp.le.s32.totalorder 1, %s12
      %p115 = scmp.lt.s32.totalorder %s12, 3
      %p116 = pnand %p114, %p115
      %p117 = pneg %p116
      // Predicated region
      $region9: #{tpu_custom_call.1} parent=5 // pred_check
        _
      $region10: #{tpu_custom_call.1} parent=5 // pred_check_branch
        %119 = sbr.rel (%p116) target = $region12
      $region11: #{tpu_custom_call.1} parent=5 // pred_region
        %s120 = ssub.s32 %s12, 1
        // Predicated region
        $region13: #{tpu_custom_call.1} parent=11 // pred_check
          %p121 = pneg %p59
        $region14: #{tpu_custom_call.1} parent=11 // pred_check_branch
          %123 = sbr.rel (%p121) target = $region16
        $region15: #{tpu_custom_call.1} parent=11 // pred_region
          _
        $region16: #{tpu_custom_call.1} parent=11 // pred_fallthru
          _
        // Predicated region
        $region17: #{tpu_custom_call.1} parent=11 // pred_check
          %p124 = pneg %p80
        $region18: #{tpu_custom_call.1} parent=11 // pred_check_branch
          %126 = sbr.rel (%p124) target = $region20
        $region19: #{tpu_custom_call.1} parent=11 // pred_region
          _
        $region20: #{tpu_custom_call.1} parent=11 // pred_fallthru
          _
      $region12: #{tpu_custom_call.1} parent=5 // pred_fallthru
        _
      %p127 = scmp.lt.s32.totalorder %s12, 2
      // Predicated region
      $region21: #{tpu_custom_call.1} parent=5 // pred_check
        %p128 = pneg %p127
      $region22: #{tpu_custom_call.1} parent=5 // pred_check_branch
        %130 = sbr.rel (%p128) target = $region24
      $region23: #{tpu_custom_call.1} parent=5 // pred_region
        // Predicated region
        $region25: #{tpu_custom_call.1} parent=23 // pred_check
          %p131 = pneg %p32
        $region26: #{tpu_custom_call.1} parent=23 // pred_check_branch
          %133 = sbr.rel (%p131) target = $region28
        $region27: #{tpu_custom_call.1} parent=23 // pred_region
          %s134 = smul.u32 32, %s12
          %p135 = scmp.lt.s32.totalorder %s134, 63
          %s136 = scalar_select %p135, %s134, 63
          %s137 = smul.addr %s136, 4
          %s138 = scalar_lea.vmem %s0, %s137
          %s139 = smul.u32 32, %s12
        $region28: #{tpu_custom_call.1} parent=23 // pred_fallthru
          _
      $region24: #{tpu_custom_call.1} parent=5 // pred_fallthru
        _
      %p140 = scmp.le.s32.totalorder 1, %s12
      %p141 = scmp.lt.s32.totalorder %s12, 3
      %p142 = pnand %p140, %p141
      %p143 = pneg %p142
      // Predicated region
      $region29: #{tpu_custom_call.1} parent=5 // pred_check
        _
      $region30: #{tpu_custom_call.1} parent=5 // pred_check_branch
        %145 = sbr.rel (%p142) target = $region32
      $region31: #{tpu_custom_call.1} parent=5 // pred_region
        %s146 = ssub.s32 %s12, 1
        %s147 = smul.u32 32, %s17
        %p148 = scmp.lt.s32.totalorder %s147, 63
        %s149 = scalar_select %p148, %s147, 63
        %s150 = smul.addr %s149, 4
        %s151 = scalar_lea.vmem %s0, %s150
        %p152 = pneg %p38
        %p153 = pneg %p35
        %p154 = pneg %p59
        %p155 = pneg %p56
        %p156 = pneg %p80
        %p157 = pneg %p77
        %p158 = pneg %p106
        %p159 = pneg %p103
        %s160 = sand.u32 %s93, 1
        %s161 = scalar_lea.sflag [#allocation3], %s160
        %s162 = sand.u32 %s93, 1
        %s163 = smul.addr %s162, 256
        %s164 = scalar_lea.vmem [#allocation2], %s163
        %s165 = smul.u32 32, %s17
        %p166 = scmp.lt.s32.totalorder %s165, 63
        %s167 = scalar_select %p166, %s165, 63
        %s168 = smul.addr %s167, 4
        %s169 = scalar_lea.vmem %s0, %s168
        %s170 = smul.u32 32, %s17
        %s171 = smul.u32 32, %s17
        %v173 = vld [vmem:[%s169] sm:$0xf]
        %v174 = vld [vmem:[%s169 + $0x4] sm:$0xf]
        %v175 = vld [vmem:[%s169 + $0x8] sm:$0xf]
        %v176 = vld [vmem:[%s169 + $0xc] sm:$0xf]
        %v177 = vld [vmem:[%s169 + $0x10] sm:$0xf]
        %v178 = vld [vmem:[%s169 + $0x14] sm:$0xf]
        %v179 = vld [vmem:[%s169 + $0x18] sm:$0xf]
        %v180 = vld [vmem:[%s169 + $0x1c] sm:$0xf]
        %v181 = vld [vmem:[%s169 + $0x20] sm:$0xf]
        %v182 = vld [vmem:[%s169 + $0x24] sm:$0xf]
        %v183 = vld [vmem:[%s169 + $0x28] sm:$0xf]
        %v184 = vld [vmem:[%s169 + $0x2c] sm:$0xf]
        %v185 = vld [vmem:[%s169 + $0x30] sm:$0xf]
        %v186 = vld [vmem:[%s169 + $0x34] sm:$0xf]
        %v187 = vld [vmem:[%s169 + $0x38] sm:$0xf]
        %v188 = vld [vmem:[%s169 + $0x3c] sm:$0xf]
        %v189 = vld [vmem:[%s169 + $0x40] sm:$0xf]
        %v190 = vld [vmem:[%s169 + $0x44] sm:$0xf]
        %v191 = vld [vmem:[%s169 + $0x48] sm:$0xf]
        %v192 = vld [vmem:[%s169 + $0x4c] sm:$0xf]
        %v193 = vld [vmem:[%s169 + $0x50] sm:$0xf]
        %v194 = vld [vmem:[%s169 + $0x54] sm:$0xf]
        %v195 = vld [vmem:[%s169 + $0x58] sm:$0xf]
        %v196 = vld [vmem:[%s169 + $0x5c] sm:$0xf]
        %v197 = vld [vmem:[%s169 + $0x60] sm:$0xf]
        %v198 = vld [vmem:[%s169 + $0x64] sm:$0xf]
        %v199 = vld [vmem:[%s169 + $0x68] sm:$0xf]
        %v200 = vld [vmem:[%s169 + $0x6c] sm:$0xf]
        %v201 = vld [vmem:[%s169 + $0x70] sm:$0xf]
        %v202 = vld [vmem:[%s169 + $0x74] sm:$0xf]
        %v203 = vld [vmem:[%s169 + $0x78] sm:$0xf]
        %v204 = vld [vmem:[%s169 + $0x7c] sm:$0xf]
        %v205 = vld [vmem:[%s1] sm:$0xff]
        %v206 = vld [vmem:[%s1 + $0x8] sm:$0xff]
        %v207 = vld [vmem:[%s1 + $0x10] sm:$0xff]
        %v208 = vld [vmem:[%s1 + $0x18] sm:$0xff]
        %v209 = vld [vmem:[%s1 + $0x20] sm:$0xff]
        %v210 = vld [vmem:[%s1 + $0x28] sm:$0xff]
        %v243 = vunpack.c.l.b16 %v173
        %v244 = vunpack.c.l.b16 %v174
        %v245 = vunpack.c.l.b16 %v175
        %v246 = vunpack.c.l.b16 %v176
        %v247 = vunpack.c.l.b16 %v177
        %v248 = vunpack.c.l.b16 %v178
        %v249 = vunpack.c.l.b16 %v179
        %v250 = vunpack.c.l.b16 %v180
        %v251 = vunpack.c.l.b16 %v181
        %v252 = vunpack.c.l.b16 %v182
        %v253 = vunpack.c.l.b16 %v183
        %v254 = vunpack.c.l.b16 %v184
        %v255 = vunpack.c.l.b16 %v185
        %v256 = vunpack.c.l.b16 %v186
        %v257 = vunpack.c.l.b16 %v187
        %v258 = vunpack.c.l.b16 %v188
        %v259 = vunpack.c.l.b16 %v189
        %v260 = vunpack.c.l.b16 %v190
        %v261 = vunpack.c.l.b16 %v191
        %v262 = vunpack.c.l.b16 %v192
        %v263 = vunpack.c.l.b16 %v193
        %v264 = vunpack.c.l.b16 %v194
        %v265 = vunpack.c.l.b16 %v195
        %v266 = vunpack.c.l.b16 %v196
        %v267 = vunpack.c.l.b16 %v197
        %v268 = vunpack.c.l.b16 %v198
        %v269 = vunpack.c.l.b16 %v199
        %v270 = vunpack.c.l.b16 %v200
        %v271 = vunpack.c.l.b16 %v201
        %v272 = vunpack.c.l.b16 %v202
        %v273 = vunpack.c.l.b16 %v203
        %v274 = vunpack.c.l.b16 %v204
        %v275 = vpack.c.b16 %v244, %v243
        %v276 = vpack.c.b16 %v246, %v245
        %v277 = vpack.c.b16 %v248, %v247
        %v278 = vpack.c.b16 %v250, %v249
        %v279 = vpack.c.b16 %v252, %v251
        %v280 = vpack.c.b16 %v254, %v253
        %v281 = vpack.c.b16 %v256, %v255
        %v282 = vpack.c.b16 %v258, %v257
        %v283 = vpack.c.b16 %v260, %v259
        %v284 = vpack.c.b16 %v262, %v261
        %v285 = vpack.c.b16 %v264, %v263
        %v286 = vpack.c.b16 %v266, %v265
        %v287 = vpack.c.b16 %v268, %v267
        %v288 = vpack.c.b16 %v270, %v269
        %v289 = vpack.c.b16 %v272, %v271
        %v290 = vpack.c.b16 %v274, %v273
        %v297 = vunpack.c.l.b16 %v205
        %v298 = vunpack.c.h.b16 %v205
        %v299 = vunpack.c.l.b16 %v206
        %v300 = vunpack.c.h.b16 %v206
        %v301 = vunpack.c.l.b16 %v207
        %v302 = vunpack.c.h.b16 %v207
        %v303 = vunpack.c.l.b16 %v208
        %v304 = vunpack.c.h.b16 %v208
        %v305 = vunpack.c.l.b16 %v209
        %v306 = vunpack.c.h.b16 %v209
        %v307 = vunpack.c.l.b16 %v210
        %v308 = vunpack.c.h.b16 %v210
        %v309 = vpack.c.b16 %v299, %v297
        %v310 = vpack.c.b16 %v300, %v298
        %v311 = vpack.c.b16 %v303, %v301
        %v312 = vpack.c.b16 %v304, %v302
        %v313 = vpack.c.b16 %v307, %v305
        %v314 = vpack.c.b16 %v308, %v306
        %vm321 = vcmask 392192
        %v323 = vsel %vm321, %v275, 0
        %v326 = vsel %vm321, %v276, 0
        %v329 = vsel %vm321, %v277, 0
        %v332 = vsel %vm321, %v278, 0
        %v335 = vsel %vm321, %v279, 0
        %v338 = vsel %vm321, %v280, 0
        %v341 = vsel %vm321, %v281, 0
        %v344 = vsel %vm321, %v282, 0
        %v347 = vsel %vm321, %v283, 0
        %v350 = vsel %vm321, %v284, 0
        %v353 = vsel %vm321, %v285, 0
        %v356 = vsel %vm321, %v286, 0
        %v359 = vsel %vm321, %v287, 0
        %v362 = vsel %vm321, %v288, 0
        %v365 = vsel %vm321, %v289, 0
        %v368 = vsel %vm321, %v290, 0
        %370 = vmatpush.bf16.msra.mxu0 0
        %371 = vmatpush.bf16.msra.mxu0 0
        %372 = vmatpush.bf16.msra.mxu0 0
        %373 = vmatpush.bf16.msra.mxu0 0
        %374 = vmatpush.bf16.msra.mxu0 0
        %375 = vmatpush.bf16.msra.mxu0 %v313
        %376 = vmatpush.bf16.msra.mxu0 %v311
        %377 = vmatpush.bf16.msra.mxu0 %v309
        %378 = vmatmul.bf16.gmra.mxu0 %v323
        %v379 = vpop.f32.mrf.mxu0
        %v380 = vadd.f32 0.0, %v379
        %v381 = vpop.f32.mrf.mxu0
        %v382 = vadd.f32 0.0, %v381
        %383 = vmatmul.bf16.gmra.mxu0 %v326
        %v384 = vpop.f32.mrf.mxu0
        %v385 = vadd.f32 0.0, %v384
        %v386 = vpop.f32.mrf.mxu0
        %v387 = vadd.f32 0.0, %v386
        %388 = vmatmul.bf16.gmra.mxu0 %v329
        %v389 = vpop.f32.mrf.mxu0
        %v390 = vadd.f32 0.0, %v389
        %v391 = vpop.f32.mrf.mxu0
        %v392 = vadd.f32 0.0, %v391
        %393 = vmatmul.bf16.gmra.mxu0 %v332
        %v394 = vpop.f32.mrf.mxu0
        %v395 = vadd.f32 0.0, %v394
        %v396 = vpop.f32.mrf.mxu0
        %v397 = vadd.f32 0.0, %v396
        %398 = vmatmul.bf16.gmra.mxu0 %v335
        %v399 = vpop.f32.mrf.mxu0
        %v400 = vadd.f32 0.0, %v399
        %v401 = vpop.f32.mrf.mxu0
        %v402 = vadd.f32 0.0, %v401
        %403 = vmatmul.bf16.gmra.mxu0 %v338
        %v404 = vpop.f32.mrf.mxu0
        %v405 = vadd.f32 0.0, %v404
        %v406 = vpop.f32.mrf.mxu0
        %v407 = vadd.f32 0.0, %v406
        %408 = vmatmul.bf16.gmra.mxu0 %v341
        %v409 = vpop.f32.mrf.mxu0
        %v410 = vadd.f32 0.0, %v409
        %v411 = vpop.f32.mrf.mxu0
        %v412 = vadd.f32 0.0, %v411
        %413 = vmatmul.bf16.gmra.mxu0 %v344
        %v414 = vpop.f32.mrf.mxu0
        %v415 = vadd.f32 0.0, %v414
        %v416 = vpop.f32.mrf.mxu0
        %v417 = vadd.f32 0.0, %v416
        %418 = vmatmul.bf16.gmra.mxu0 %v347
        %v419 = vpop.f32.mrf.mxu0
        %v420 = vadd.f32 0.0, %v419
        %v421 = vpop.f32.mrf.mxu0
        %v422 = vadd.f32 0.0, %v421
        %423 = vmatmul.bf16.gmra.mxu0 %v350
        %v424 = vpop.f32.mrf.mxu0
        %v425 = vadd.f32 0.0, %v424
        %v426 = vpop.f32.mrf.mxu0
        %v427 = vadd.f32 0.0, %v426
        %428 = vmatmul.bf16.gmra.mxu0 %v353
        %v429 = vpop.f32.mrf.mxu0
        %v430 = vadd.f32 0.0, %v429
        %v431 = vpop.f32.mrf.mxu0
        %v432 = vadd.f32 0.0, %v431
        %433 = vmatmul.bf16.gmra.mxu0 %v356
        %v434 = vpop.f32.mrf.mxu0
        %v435 = vadd.f32 0.0, %v434
        %v436 = vpop.f32.mrf.mxu0
        %v437 = vadd.f32 0.0, %v436
        %438 = vmatmul.bf16.gmra.mxu0 %v359
        %v439 = vpop.f32.mrf.mxu0
        %v440 = vadd.f32 0.0, %v439
        %v441 = vpop.f32.mrf.mxu0
        %v442 = vadd.f32 0.0, %v441
        %443 = vmatmul.bf16.gmra.mxu0 %v362
        %v444 = vpop.f32.mrf.mxu0
        %v445 = vadd.f32 0.0, %v444
        %v446 = vpop.f32.mrf.mxu0
        %v447 = vadd.f32 0.0, %v446
        %448 = vmatmul.bf16.gmra.mxu0 %v365
        %v449 = vpop.f32.mrf.mxu0
        %v450 = vadd.f32 0.0, %v449
        %v451 = vpop.f32.mrf.mxu0
        %v452 = vadd.f32 0.0, %v451
        %453 = vmatmul.bf16.gmra.mxu0 %v368
        %v454 = vpop.f32.mrf.mxu0
        %v455 = vadd.f32 0.0, %v454
        %v456 = vpop.f32.mrf.mxu0
        %v457 = vadd.f32 0.0, %v456
        %458 = vdwg.mxu0
        %459 = vmatpush.bf16.msra.mxu0 0
        %460 = vmatpush.bf16.msra.mxu0 0
        %461 = vmatpush.bf16.msra.mxu0 0
        %462 = vmatpush.bf16.msra.mxu0 0
        %463 = vmatpush.bf16.msra.mxu0 0
        %464 = vmatpush.bf16.msra.mxu0 %v314
        %465 = vmatpush.bf16.msra.mxu0 %v312
        %466 = vmatpush.bf16.msra.mxu0 %v310
        %467 = vmatmul.bf16.gmra.mxu0 %v323
        %v468 = vpop.f32.mrf.mxu0
        %v469 = vadd.f32 0.0, %v468
        %v470 = vpop.f32.mrf.mxu0
        %v471 = vadd.f32 0.0, %v470
        %472 = vmatmul.bf16.gmra.mxu0 %v326
        %v473 = vpop.f32.mrf.mxu0
        %v474 = vadd.f32 0.0, %v473
        %v475 = vpop.f32.mrf.mxu0
        %v476 = vadd.f32 0.0, %v475
        %477 = vmatmul.bf16.gmra.mxu0 %v329
        %v478 = vpop.f32.mrf.mxu0
        %v479 = vadd.f32 0.0, %v478
        %v480 = vpop.f32.mrf.mxu0
        %v481 = vadd.f32 0.0, %v480
        %482 = vmatmul.bf16.gmra.mxu0 %v332
        %v483 = vpop.f32.mrf.mxu0
        %v484 = vadd.f32 0.0, %v483
        %v485 = vpop.f32.mrf.mxu0
        %v486 = vadd.f32 0.0, %v485
        %487 = vmatmul.bf16.gmra.mxu0 %v335
        %v488 = vpop.f32.mrf.mxu0
        %v489 = vadd.f32 0.0, %v488
        %v490 = vpop.f32.mrf.mxu0
        %v491 = vadd.f32 0.0, %v490
        %492 = vmatmul.bf16.gmra.mxu0 %v338
        %v493 = vpop.f32.mrf.mxu0
        %v494 = vadd.f32 0.0, %v493
        %v495 = vpop.f32.mrf.mxu0
        %v496 = vadd.f32 0.0, %v495
        %497 = vmatmul.bf16.gmra.mxu0 %v341
        %v498 = vpop.f32.mrf.mxu0
        %v499 = vadd.f32 0.0, %v498
        %v500 = vpop.f32.mrf.mxu0
        %v501 = vadd.f32 0.0, %v500
        %502 = vmatmul.bf16.gmra.mxu0 %v344
        %v503 = vpop.f32.mrf.mxu0
        %v504 = vadd.f32 0.0, %v503
        %v505 = vpop.f32.mrf.mxu0
        %v506 = vadd.f32 0.0, %v505
        %507 = vmatmul.bf16.gmra.mxu0 %v347
        %v508 = vpop.f32.mrf.mxu0
        %v509 = vadd.f32 0.0, %v508
        %v510 = vpop.f32.mrf.mxu0
        %v511 = vadd.f32 0.0, %v510
        %512 = vmatmul.bf16.gmra.mxu0 %v350
        %v513 = vpop.f32.mrf.mxu0
        %v514 = vadd.f32 0.0, %v513
        %v515 = vpop.f32.mrf.mxu0
        %v516 = vadd.f32 0.0, %v515
        %517 = vmatmul.bf16.gmra.mxu0 %v353
        %v518 = vpop.f32.mrf.mxu0
        %v519 = vadd.f32 0.0, %v518
        %v520 = vpop.f32.mrf.mxu0
        %v521 = vadd.f32 0.0, %v520
        %522 = vmatmul.bf16.gmra.mxu0 %v356
        %v523 = vpop.f32.mrf.mxu0
        %v524 = vadd.f32 0.0, %v523
        %v525 = vpop.f32.mrf.mxu0
        %v526 = vadd.f32 0.0, %v525
        %527 = vmatmul.bf16.gmra.mxu0 %v359
        %v528 = vpop.f32.mrf.mxu0
        %v529 = vadd.f32 0.0, %v528
        %v530 = vpop.f32.mrf.mxu0
        %v531 = vadd.f32 0.0, %v530
        %532 = vmatmul.bf16.gmra.mxu0 %v362
        %v533 = vpop.f32.mrf.mxu0
        %v534 = vadd.f32 0.0, %v533
        %v535 = vpop.f32.mrf.mxu0
        %v536 = vadd.f32 0.0, %v535
        %537 = vmatmul.bf16.gmra.mxu0 %v365
        %v538 = vpop.f32.mrf.mxu0
        %v539 = vadd.f32 0.0, %v538
        %v540 = vpop.f32.mrf.mxu0
        %v541 = vadd.f32 0.0, %v540
        %542 = vmatmul.bf16.gmra.mxu0 %v368
        %v543 = vpop.f32.mrf.mxu0
        %v544 = vadd.f32 0.0, %v543
        %v545 = vpop.f32.mrf.mxu0
        %v546 = vadd.f32 0.0, %v545
        %547 = vdwg.mxu0
        %v548 = vmul.f32 %v380, %v380
        %v549 = vmul.f32 %v469, %v469
        %v550 = vmul.f32 %v382, %v382
        %v551 = vmul.f32 %v471, %v471
        %v552 = vmul.f32 %v385, %v385
        %v553 = vmul.f32 %v474, %v474
        %v554 = vmul.f32 %v387, %v387
        %v555 = vmul.f32 %v476, %v476
        %v556 = vmul.f32 %v390, %v390
        %v557 = vmul.f32 %v479, %v479
        %v558 = vmul.f32 %v392, %v392
        %v559 = vmul.f32 %v481, %v481
        %v560 = vmul.f32 %v395, %v395
        %v561 = vmul.f32 %v484, %v484
        %v562 = vmul.f32 %v397, %v397
        %v563 = vmul.f32 %v486, %v486
        %v564 = vmul.f32 %v400, %v400
        %v565 = vmul.f32 %v489, %v489
        %v566 = vmul.f32 %v402, %v402
        %v567 = vmul.f32 %v491, %v491
        %v568 = vmul.f32 %v405, %v405
        %v569 = vmul.f32 %v494, %v494
        %v570 = vmul.f32 %v407, %v407
        %v571 = vmul.f32 %v496, %v496
        %v572 = vmul.f32 %v410, %v410
        %v573 = vmul.f32 %v499, %v499
        %v574 = vmul.f32 %v412, %v412
        %v575 = vmul.f32 %v501, %v501
        %v576 = vmul.f32 %v415, %v415
        %v577 = vmul.f32 %v504, %v504
        %v578 = vmul.f32 %v417, %v417
        %v579 = vmul.f32 %v506, %v506
        %v580 = vmul.f32 %v420, %v420
        %v581 = vmul.f32 %v509, %v509
        %v582 = vmul.f32 %v422, %v422
        %v583 = vmul.f32 %v511, %v511
        %v584 = vmul.f32 %v425, %v425
        %v585 = vmul.f32 %v514, %v514
        %v586 = vmul.f32 %v427, %v427
        %v587 = vmul.f32 %v516, %v516
        %v588 = vmul.f32 %v430, %v430
        %v589 = vmul.f32 %v519, %v519
        %v590 = vmul.f32 %v432, %v432
        %v591 = vmul.f32 %v521, %v521
        %v592 = vmul.f32 %v435, %v435
        %v593 = vmul.f32 %v524, %v524
        %v594 = vmul.f32 %v437, %v437
        %v595 = vmul.f32 %v526, %v526
        %v596 = vmul.f32 %v440, %v440
        %v597 = vmul.f32 %v529, %v529
        %v598 = vmul.f32 %v442, %v442
        %v599 = vmul.f32 %v531, %v531
        %v600 = vmul.f32 %v445, %v445
        %v601 = vmul.f32 %v534, %v534
        %v602 = vmul.f32 %v447, %v447
        %v603 = vmul.f32 %v536, %v536
        %v604 = vmul.f32 %v450, %v450
        %v605 = vmul.f32 %v539, %v539
        %v606 = vmul.f32 %v452, %v452
        %v607 = vmul.f32 %v541, %v541
        %v608 = vmul.f32 %v455, %v455
        %v609 = vmul.f32 %v544, %v544
        %v610 = vmul.f32 %v457, %v457
        %v611 = vmul.f32 %v546, %v546
        %v612 = vadd.f32 %v548, %v549
        %613 = vadd.xlane.f32.xlu0 %v612
        %v614 = vpop.xlane.xlu0 %613
        %v615 = vadd.f32 %v550, %v551
        %616 = vadd.xlane.f32.xlu0 %v615
        %v617 = vpop.xlane.xlu0 %616
        %v618 = vadd.f32 %v552, %v553
        %619 = vadd.xlane.f32.xlu0 %v618
        %v620 = vpop.xlane.xlu0 %619
        %v621 = vadd.f32 %v554, %v555
        %622 = vadd.xlane.f32.xlu0 %v621
        %v623 = vpop.xlane.xlu0 %622
        %v624 = vadd.f32 %v556, %v557
        %625 = vadd.xlane.f32.xlu0 %v624
        %v626 = vpop.xlane.xlu0 %625
        %v627 = vadd.f32 %v558, %v559
        %628 = vadd.xlane.f32.xlu0 %v627
        %v629 = vpop.xlane.xlu0 %628
        %v630 = vadd.f32 %v560, %v561
        %631 = vadd.xlane.f32.xlu0 %v630
        %v632 = vpop.xlane.xlu0 %631
        %v633 = vadd.f32 %v562, %v563
        %634 = vadd.xlane.f32.xlu0 %v633
        %v635 = vpop.xlane.xlu0 %634
        %v636 = vadd.f32 %v564, %v565
        %637 = vadd.xlane.f32.xlu0 %v636
        %v638 = vpop.xlane.xlu0 %637
        %v639 = vadd.f32 %v566, %v567
        %640 = vadd.xlane.f32.xlu0 %v639
        %v641 = vpop.xlane.xlu0 %640
        %v642 = vadd.f32 %v568, %v569
        %643 = vadd.xlane.f32.xlu0 %v642
        %v644 = vpop.xlane.xlu0 %643
        %v645 = vadd.f32 %v570, %v571
        %646 = vadd.xlane.f32.xlu0 %v645
        %v647 = vpop.xlane.xlu0 %646
        %v648 = vadd.f32 %v572, %v573
        %649 = vadd.xlane.f32.xlu0 %v648
        %v650 = vpop.xlane.xlu0 %649
        %v651 = vadd.f32 %v574, %v575
        %652 = vadd.xlane.f32.xlu0 %v651
        %v653 = vpop.xlane.xlu0 %652
        %v654 = vadd.f32 %v576, %v577
        %655 = vadd.xlane.f32.xlu0 %v654
        %v656 = vpop.xlane.xlu0 %655
        %v657 = vadd.f32 %v578, %v579
        %658 = vadd.xlane.f32.xlu0 %v657
        %v659 = vpop.xlane.xlu0 %658
        %v660 = vadd.f32 %v580, %v581
        %661 = vadd.xlane.f32.xlu0 %v660
        %v662 = vpop.xlane.xlu0 %661
        %v663 = vadd.f32 %v582, %v583
        %664 = vadd.xlane.f32.xlu0 %v663
        %v665 = vpop.xlane.xlu0 %664
        %v666 = vadd.f32 %v584, %v585
        %667 = vadd.xlane.f32.xlu0 %v666
        %v668 = vpop.xlane.xlu0 %667
        %v669 = vadd.f32 %v586, %v587
        %670 = vadd.xlane.f32.xlu0 %v669
        %v671 = vpop.xlane.xlu0 %670
        %v672 = vadd.f32 %v588, %v589
        %673 = vadd.xlane.f32.xlu0 %v672
        %v674 = vpop.xlane.xlu0 %673
        %v675 = vadd.f32 %v590, %v591
        %676 = vadd.xlane.f32.xlu0 %v675
        %v677 = vpop.xlane.xlu0 %676
        %v678 = vadd.f32 %v592, %v593
        %679 = vadd.xlane.f32.xlu0 %v678
        %v680 = vpop.xlane.xlu0 %679
        %v681 = vadd.f32 %v594, %v595
        %682 = vadd.xlane.f32.xlu0 %v681
        %v683 = vpop.xlane.xlu0 %682
        %v684 = vadd.f32 %v596, %v597
        %685 = vadd.xlane.f32.xlu0 %v684
        %v686 = vpop.xlane.xlu0 %685
        %v687 = vadd.f32 %v598, %v599
        %688 = vadd.xlane.f32.xlu0 %v687
        %v689 = vpop.xlane.xlu0 %688
        %v690 = vadd.f32 %v600, %v601
        %691 = vadd.xlane.f32.xlu0 %v690
        %v692 = vpop.xlane.xlu0 %691
        %v693 = vadd.f32 %v602, %v603
        %694 = vadd.xlane.f32.xlu0 %v693
        %v695 = vpop.xlane.xlu0 %694
        %v696 = vadd.f32 %v604, %v605
        %697 = vadd.xlane.f32.xlu0 %v696
        %v698 = vpop.xlane.xlu0 %697
        %v699 = vadd.f32 %v606, %v607
        %700 = vadd.xlane.f32.xlu0 %v699
        %v701 = vpop.xlane.xlu0 %700
        %v702 = vadd.f32 %v608, %v609
        %703 = vadd.xlane.f32.xlu0 %v702
        %v704 = vpop.xlane.xlu0 %703
        %v705 = vadd.f32 %v610, %v611
        %706 = vadd.xlane.f32.xlu0 %v705
        %v707 = vpop.xlane.xlu0 %706
        %v708 = vrcp.pop 256.0
        %v709 = vmul.f32 256.0, %v708
        %v710 = vsub.f32 1.0, %v709
        %v711 = vmul.f32 %v708, %v710
        %v712 = vadd.f32 %v708, %v711
        %vm713 = vweird.f32 %v708
        %v714 = vsel %vm713, %v708, %v712
        %v715 = vmul.f32 %v614, %v714
        %v716 = vmul.f32 %v617, %v714
        %v717 = vmul.f32 %v620, %v714
        %v718 = vmul.f32 %v623, %v714
        %v719 = vmul.f32 %v626, %v714
        %v720 = vmul.f32 %v629, %v714
        %v721 = vmul.f32 %v632, %v714
        %v722 = vmul.f32 %v635, %v714
        %v723 = vmul.f32 %v638, %v714
        %v724 = vmul.f32 %v641, %v714
        %v725 = vmul.f32 %v644, %v714
        %v726 = vmul.f32 %v647, %v714
        %v727 = vmul.f32 %v650, %v714
        %v728 = vmul.f32 %v653, %v714
        %v729 = vmul.f32 %v656, %v714
        %v730 = vmul.f32 %v659, %v714
        %v731 = vmul.f32 %v662, %v714
        %v732 = vmul.f32 %v665, %v714
        %v733 = vmul.f32 %v668, %v714
        %v734 = vmul.f32 %v671, %v714
        %v735 = vmul.f32 %v674, %v714
        %v736 = vmul.f32 %v677, %v714
        %v737 = vmul.f32 %v680, %v714
        %v738 = vmul.f32 %v683, %v714
        %v739 = vmul.f32 %v686, %v714
        %v740 = vmul.f32 %v689, %v714
        %v741 = vmul.f32 %v692, %v714
        %v742 = vmul.f32 %v695, %v714
        %v743 = vmul.f32 %v698, %v714
        %v744 = vmul.f32 %v701, %v714
        %v745 = vmul.f32 %v704, %v714
        %v746 = vmul.f32 %v707, %v714
        %v747 = vadd.f32 %v715, 1e-05
        %v748 = vadd.f32 %v716, 1e-05
        %v749 = vadd.f32 %v717, 1e-05
        %v750 = vadd.f32 %v718, 1e-05
        %v751 = vadd.f32 %v719, 1e-05
        %v752 = vadd.f32 %v720, 1e-05
        %v753 = vadd.f32 %v721, 1e-05
        %v754 = vadd.f32 %v722, 1e-05
        %v755 = vadd.f32 %v723, 1e-05
        %v756 = vadd.f32 %v724, 1e-05
        %v757 = vadd.f32 %v725, 1e-05
        %v758 = vadd.f32 %v726, 1e-05
        %v759 = vadd.f32 %v727, 1e-05
        %v760 = vadd.f32 %v728, 1e-05
        %v761 = vadd.f32 %v729, 1e-05
        %v762 = vadd.f32 %v730, 1e-05
        %v763 = vadd.f32 %v731, 1e-05
        %v764 = vadd.f32 %v732, 1e-05
        %v765 = vadd.f32 %v733, 1e-05
        %v766 = vadd.f32 %v734, 1e-05
        %v767 = vadd.f32 %v735, 1e-05
        %v768 = vadd.f32 %v736, 1e-05
        %v769 = vadd.f32 %v737, 1e-05
        %v770 = vadd.f32 %v738, 1e-05
        %v771 = vadd.f32 %v739, 1e-05
        %v772 = vadd.f32 %v740, 1e-05
        %v773 = vadd.f32 %v741, 1e-05
        %v774 = vadd.f32 %v742, 1e-05
        %v775 = vadd.f32 %v743, 1e-05
        %v776 = vadd.f32 %v744, 1e-05
        %v777 = vadd.f32 %v745, 1e-05
        %v778 = vadd.f32 %v746, 1e-05
        %v779 = vrsqrt.pop %v747
        %v780 = vmul.f32 %v779, %v747
        %v781 = vmul.f32 %v780, %v779
        %v782 = vmul.f32 0.5, %v781
        %v783 = vsub.f32 1.5, %v782
        %v784 = vmul.f32 %v779, %v783
        %vm785 = vweird.f32 %v747
        %vm786 = vweird.f32 %v779
        %vm787 = vmor %vm785, %vm786
        %v788 = vsel %vm787, %v779, %v784
        %v789 = vrsqrt.pop %v748
        %v790 = vmul.f32 %v789, %v748
        %v791 = vmul.f32 %v790, %v789
        %v792 = vmul.f32 0.5, %v791
        %v793 = vsub.f32 1.5, %v792
        %v794 = vmul.f32 %v789, %v793
        %vm795 = vweird.f32 %v748
        %vm796 = vweird.f32 %v789
        %vm797 = vmor %vm795, %vm796
        %v798 = vsel %vm797, %v789, %v794
        %v799 = vrsqrt.pop %v749
        %v800 = vmul.f32 %v799, %v749
        %v801 = vmul.f32 %v800, %v799
        %v802 = vmul.f32 0.5, %v801
        %v803 = vsub.f32 1.5, %v802
        %v804 = vmul.f32 %v799, %v803
        %vm805 = vweird.f32 %v749
        %vm806 = vweird.f32 %v799
        %vm807 = vmor %vm805, %vm806
        %v808 = vsel %vm807, %v799, %v804
        %v809 = vrsqrt.pop %v750
        %v810 = vmul.f32 %v809, %v750
        %v811 = vmul.f32 %v810, %v809
        %v812 = vmul.f32 0.5, %v811
        %v813 = vsub.f32 1.5, %v812
        %v814 = vmul.f32 %v809, %v813
        %vm815 = vweird.f32 %v750
        %vm816 = vweird.f32 %v809
        %vm817 = vmor %vm815, %vm816
        %v818 = vsel %vm817, %v809, %v814
        %v819 = vrsqrt.pop %v751
        %v820 = vmul.f32 %v819, %v751
        %v821 = vmul.f32 %v820, %v819
        %v822 = vmul.f32 0.5, %v821
        %v823 = vsub.f32 1.5, %v822
        %v824 = vmul.f32 %v819, %v823
        %vm825 = vweird.f32 %v751
        %vm826 = vweird.f32 %v819
        %vm827 = vmor %vm825, %vm826
        %v828 = vsel %vm827, %v819, %v824
        %v829 = vrsqrt.pop %v752
        %v830 = vmul.f32 %v829, %v752
        %v831 = vmul.f32 %v830, %v829
        %v832 = vmul.f32 0.5, %v831
        %v833 = vsub.f32 1.5, %v832
        %v834 = vmul.f32 %v829, %v833
        %vm835 = vweird.f32 %v752
        %vm836 = vweird.f32 %v829
        %vm837 = vmor %vm835, %vm836
        %v838 = vsel %vm837, %v829, %v834
        %v839 = vrsqrt.pop %v753
        %v840 = vmul.f32 %v839, %v753
        %v841 = vmul.f32 %v840, %v839
        %v842 = vmul.f32 0.5, %v841
        %v843 = vsub.f32 1.5, %v842
        %v844 = vmul.f32 %v839, %v843
        %vm845 = vweird.f32 %v753
        %vm846 = vweird.f32 %v839
        %vm847 = vmor %vm845, %vm846
        %v848 = vsel %vm847, %v839, %v844
        %v849 = vrsqrt.pop %v754
        %v850 = vmul.f32 %v849, %v754
        %v851 = vmul.f32 %v850, %v849
        %v852 = vmul.f32 0.5, %v851
        %v853 = vsub.f32 1.5, %v852
        %v854 = vmul.f32 %v849, %v853
        %vm855 = vweird.f32 %v754
        %vm856 = vweird.f32 %v849
        %vm857 = vmor %vm855, %vm856
        %v858 = vsel %vm857, %v849, %v854
        %v859 = vrsqrt.pop %v755
        %v860 = vmul.f32 %v859, %v755
        %v861 = vmul.f32 %v860, %v859
        %v862 = vmul.f32 0.5, %v861
        %v863 = vsub.f32 1.5, %v862
        %v864 = vmul.f32 %v859, %v863
        %vm865 = vweird.f32 %v755
        %vm866 = vweird.f32 %v859
        %vm867 = vmor %vm865, %vm866
        %v868 = vsel %vm867, %v859, %v864
        %v869 = vrsqrt.pop %v756
        %v870 = vmul.f32 %v869, %v756
        %v871 = vmul.f32 %v870, %v869
        %v872 = vmul.f32 0.5, %v871
        %v873 = vsub.f32 1.5, %v872
        %v874 = vmul.f32 %v869, %v873
        %vm875 = vweird.f32 %v756
        %vm876 = vweird.f32 %v869
        %vm877 = vmor %vm875, %vm876
        %v878 = vsel %vm877, %v869, %v874
        %v879 = vrsqrt.pop %v757
        %v880 = vmul.f32 %v879, %v757
        %v881 = vmul.f32 %v880, %v879
        %v882 = vmul.f32 0.5, %v881
        %v883 = vsub.f32 1.5, %v882
        %v884 = vmul.f32 %v879, %v883
        %vm885 = vweird.f32 %v757
        %vm886 = vweird.f32 %v879
        %vm887 = vmor %vm885, %vm886
        %v888 = vsel %vm887, %v879, %v884
        %v889 = vrsqrt.pop %v758
        %v890 = vmul.f32 %v889, %v758
        %v891 = vmul.f32 %v890, %v889
        %v892 = vmul.f32 0.5, %v891
        %v893 = vsub.f32 1.5, %v892
        %v894 = vmul.f32 %v889, %v893
        %vm895 = vweird.f32 %v758
        %vm896 = vweird.f32 %v889
        %vm897 = vmor %vm895, %vm896
        %v898 = vsel %vm897, %v889, %v894
        %v899 = vrsqrt.pop %v759
        %v900 = vmul.f32 %v899, %v759
        %v901 = vmul.f32 %v900, %v899
        %v902 = vmul.f32 0.5, %v901
        %v903 = vsub.f32 1.5, %v902
        %v904 = vmul.f32 %v899, %v903
        %vm905 = vweird.f32 %v759
        %vm906 = vweird.f32 %v899
        %vm907 = vmor %vm905, %vm906
        %v908 = vsel %vm907, %v899, %v904
        %v909 = vrsqrt.pop %v760
        %v910 = vmul.f32 %v909, %v760
        %v911 = vmul.f32 %v910, %v909
        %v912 = vmul.f32 0.5, %v911
        %v913 = vsub.f32 1.5, %v912
        %v914 = vmul.f32 %v909, %v913
        %vm915 = vweird.f32 %v760
        %vm916 = vweird.f32 %v909
        %vm917 = vmor %vm915, %vm916
        %v918 = vsel %vm917, %v909, %v914
        %v919 = vrsqrt.pop %v761
        %v920 = vmul.f32 %v919, %v761
        %v921 = vmul.f32 %v920, %v919
        %v922 = vmul.f32 0.5, %v921
        %v923 = vsub.f32 1.5, %v922
        %v924 = vmul.f32 %v919, %v923
        %vm925 = vweird.f32 %v761
        %vm926 = vweird.f32 %v919
        %vm927 = vmor %vm925, %vm926
        %v928 = vsel %vm927, %v919, %v924
        %v929 = vrsqrt.pop %v762
        %v930 = vmul.f32 %v929, %v762
        %v931 = vmul.f32 %v930, %v929
        %v932 = vmul.f32 0.5, %v931
        %v933 = vsub.f32 1.5, %v932
        %v934 = vmul.f32 %v929, %v933
        %vm935 = vweird.f32 %v762
        %vm936 = vweird.f32 %v929
        %vm937 = vmor %vm935, %vm936
        %v938 = vsel %vm937, %v929, %v934
        %v939 = vrsqrt.pop %v763
        %v940 = vmul.f32 %v939, %v763
        %v941 = vmul.f32 %v940, %v939
        %v942 = vmul.f32 0.5, %v941
        %v943 = vsub.f32 1.5, %v942
        %v944 = vmul.f32 %v939, %v943
        %vm945 = vweird.f32 %v763
        %vm946 = vweird.f32 %v939
        %vm947 = vmor %vm945, %vm946
        %v948 = vsel %vm947, %v939, %v944
        %v949 = vrsqrt.pop %v764
        %v950 = vmul.f32 %v949, %v764
        %v951 = vmul.f32 %v950, %v949
        %v952 = vmul.f32 0.5, %v951
        %v953 = vsub.f32 1.5, %v952
        %v954 = vmul.f32 %v949, %v953
        %vm955 = vweird.f32 %v764
        %vm956 = vweird.f32 %v949
        %vm957 = vmor %vm955, %vm956
        %v958 = vsel %vm957, %v949, %v954
        %v959 = vrsqrt.pop %v765
        %v960 = vmul.f32 %v959, %v765
        %v961 = vmul.f32 %v960, %v959
        %v962 = vmul.f32 0.5, %v961
        %v963 = vsub.f32 1.5, %v962
        %v964 = vmul.f32 %v959, %v963
        %vm965 = vweird.f32 %v765
        %vm966 = vweird.f32 %v959
        %vm967 = vmor %vm965, %vm966
        %v968 = vsel %vm967, %v959, %v964
        %v969 = vrsqrt.pop %v766
        %v970 = vmul.f32 %v969, %v766
        %v971 = vmul.f32 %v970, %v969
        %v972 = vmul.f32 0.5, %v971
        %v973 = vsub.f32 1.5, %v972
        %v974 = vmul.f32 %v969, %v973
        %vm975 = vweird.f32 %v766
        %vm976 = vweird.f32 %v969
        %vm977 = vmor %vm975, %vm976
        %v978 = vsel %vm977, %v969, %v974
        %v979 = vrsqrt.pop %v767
        %v980 = vmul.f32 %v979, %v767
        %v981 = vmul.f32 %v980, %v979
        %v982 = vmul.f32 0.5, %v981
        %v983 = vsub.f32 1.5, %v982
        %v984 = vmul.f32 %v979, %v983
        %vm985 = vweird.f32 %v767
        %vm986 = vweird.f32 %v979
        %vm987 = vmor %vm985, %vm986
        %v988 = vsel %vm987, %v979, %v984
        %v989 = vrsqrt.pop %v768
        %v990 = vmul.f32 %v989, %v768
        %v991 = vmul.f32 %v990, %v989
        %v992 = vmul.f32 0.5, %v991
        %v993 = vsub.f32 1.5, %v992
        %v994 = vmul.f32 %v989, %v993
        %vm995 = vweird.f32 %v768
        %vm996 = vweird.f32 %v989
        %vm997 = vmor %vm995, %vm996
        %v998 = vsel %vm997, %v989, %v994
        %v999 = vrsqrt.pop %v769
        %v1000 = vmul.f32 %v999, %v769
        %v1001 = vmul.f32 %v1000, %v999
        %v1002 = vmul.f32 0.5, %v1001
        %v1003 = vsub.f32 1.5, %v1002
        %v1004 = vmul.f32 %v999, %v1003
        %vm1005 = vweird.f32 %v769
        %vm1006 = vweird.f32 %v999
        %vm1007 = vmor %vm1005, %vm1006
        %v1008 = vsel %vm1007, %v999, %v1004
        %v1009 = vrsqrt.pop %v770
        %v1010 = vmul.f32 %v1009, %v770
        %v1011 = vmul.f32 %v1010, %v1009
        %v1012 = vmul.f32 0.5, %v1011
        %v1013 = vsub.f32 1.5, %v1012
        %v1014 = vmul.f32 %v1009, %v1013
        %vm1015 = vweird.f32 %v770
        %vm1016 = vweird.f32 %v1009
        %vm1017 = vmor %vm1015, %vm1016
        %v1018 = vsel %vm1017, %v1009, %v1014
        %v1019 = vrsqrt.pop %v771
        %v1020 = vmul.f32 %v1019, %v771
        %v1021 = vmul.f32 %v1020, %v1019
        %v1022 = vmul.f32 0.5, %v1021
        %v1023 = vsub.f32 1.5, %v1022
        %v1024 = vmul.f32 %v1019, %v1023
        %vm1025 = vweird.f32 %v771
        %vm1026 = vweird.f32 %v1019
        %vm1027 = vmor %vm1025, %vm1026
        %v1028 = vsel %vm1027, %v1019, %v1024
        %v1029 = vrsqrt.pop %v772
        %v1030 = vmul.f32 %v1029, %v772
        %v1031 = vmul.f32 %v1030, %v1029
        %v1032 = vmul.f32 0.5, %v1031
        %v1033 = vsub.f32 1.5, %v1032
        %v1034 = vmul.f32 %v1029, %v1033
        %vm1035 = vweird.f32 %v772
        %vm1036 = vweird.f32 %v1029
        %vm1037 = vmor %vm1035, %vm1036
        %v1038 = vsel %vm1037, %v1029, %v1034
        %v1039 = vrsqrt.pop %v773
        %v1040 = vmul.f32 %v1039, %v773
        %v1041 = vmul.f32 %v1040, %v1039
        %v1042 = vmul.f32 0.5, %v1041
        %v1043 = vsub.f32 1.5, %v1042
        %v1044 = vmul.f32 %v1039, %v1043
        %vm1045 = vweird.f32 %v773
        %vm1046 = vweird.f32 %v1039
        %vm1047 = vmor %vm1045, %vm1046
        %v1048 = vsel %vm1047, %v1039, %v1044
        %v1049 = vrsqrt.pop %v774
        %v1050 = vmul.f32 %v1049, %v774
        %v1051 = vmul.f32 %v1050, %v1049
        %v1052 = vmul.f32 0.5, %v1051
        %v1053 = vsub.f32 1.5, %v1052
        %v1054 = vmul.f32 %v1049, %v1053
        %vm1055 = vweird.f32 %v774
        %vm1056 = vweird.f32 %v1049
        %vm1057 = vmor %vm1055, %vm1056
        %v1058 = vsel %vm1057, %v1049, %v1054
        %v1059 = vrsqrt.pop %v775
        %v1060 = vmul.f32 %v1059, %v775
        %v1061 = vmul.f32 %v1060, %v1059
        %v1062 = vmul.f32 0.5, %v1061
        %v1063 = vsub.f32 1.5, %v1062
        %v1064 = vmul.f32 %v1059, %v1063
        %vm1065 = vweird.f32 %v775
        %vm1066 = vweird.f32 %v1059
        %vm1067 = vmor %vm1065, %vm1066
        %v1068 = vsel %vm1067, %v1059, %v1064
        %v1069 = vrsqrt.pop %v776
        %v1070 = vmul.f32 %v1069, %v776
        %v1071 = vmul.f32 %v1070, %v1069
        %v1072 = vmul.f32 0.5, %v1071
        %v1073 = vsub.f32 1.5, %v1072
        %v1074 = vmul.f32 %v1069, %v1073
        %vm1075 = vweird.f32 %v776
        %vm1076 = vweird.f32 %v1069
        %vm1077 = vmor %vm1075, %vm1076
        %v1078 = vsel %vm1077, %v1069, %v1074
        %v1079 = vrsqrt.pop %v777
        %v1080 = vmul.f32 %v1079, %v777
        %v1081 = vmul.f32 %v1080, %v1079
        %v1082 = vmul.f32 0.5, %v1081
        %v1083 = vsub.f32 1.5, %v1082
        %v1084 = vmul.f32 %v1079, %v1083
        %vm1085 = vweird.f32 %v777
        %vm1086 = vweird.f32 %v1079
        %vm1087 = vmor %vm1085, %vm1086
        %v1088 = vsel %vm1087, %v1079, %v1084
        %v1089 = vrsqrt.pop %v778
        %v1090 = vmul.f32 %v1089, %v778
        %v1091 = vmul.f32 %v1090, %v1089
        %v1092 = vmul.f32 0.5, %v1091
        %v1093 = vsub.f32 1.5, %v1092
        %v1094 = vmul.f32 %v1089, %v1093
        %vm1095 = vweird.f32 %v778
        %vm1096 = vweird.f32 %v1089
        %vm1097 = vmor %vm1095, %vm1096
        %v1098 = vsel %vm1097, %v1089, %v1094
        %v1099 = vmul.f32 %v380, %v788
        %v1100 = vmul.f32 %v469, %v788
        %v1101 = vmul.f32 %v382, %v798
        %v1102 = vmul.f32 %v471, %v798
        %v1103 = vmul.f32 %v385, %v808
        %v1104 = vmul.f32 %v474, %v808
        %v1105 = vmul.f32 %v387, %v818
        %v1106 = vmul.f32 %v476, %v818
        %v1107 = vmul.f32 %v390, %v828
        %v1108 = vmul.f32 %v479, %v828
        %v1109 = vmul.f32 %v392, %v838
        %v1110 = vmul.f32 %v481, %v838
        %v1111 = vmul.f32 %v395, %v848
        %v1112 = vmul.f32 %v484, %v848
        %v1113 = vmul.f32 %v397, %v858
        %v1114 = vmul.f32 %v486, %v858
        %v1115 = vmul.f32 %v400, %v868
        %v1116 = vmul.f32 %v489, %v868
        %v1117 = vmul.f32 %v402, %v878
        %v1118 = vmul.f32 %v491, %v878
        %v1119 = vmul.f32 %v405, %v888
        %v1120 = vmul.f32 %v494, %v888
        %v1121 = vmul.f32 %v407, %v898
        %v1122 = vmul.f32 %v496, %v898
        %v1123 = vmul.f32 %v410, %v908
        %v1124 = vmul.f32 %v499, %v908
        %v1125 = vmul.f32 %v412, %v918
        %v1126 = vmul.f32 %v501, %v918
        %v1127 = vmul.f32 %v415, %v928
        %v1128 = vmul.f32 %v504, %v928
        %v1129 = vmul.f32 %v417, %v938
        %v1130 = vmul.f32 %v506, %v938
        %v1131 = vmul.f32 %v420, %v948
        %v1132 = vmul.f32 %v509, %v948
        %v1133 = vmul.f32 %v422, %v958
        %v1134 = vmul.f32 %v511, %v958
        %v1135 = vmul.f32 %v425, %v968
        %v1136 = vmul.f32 %v514, %v968
        %v1137 = vmul.f32 %v427, %v978
        %v1138 = vmul.f32 %v516, %v978
        %v1139 = vmul.f32 %v430, %v988
        %v1140 = vmul.f32 %v519, %v988
        %v1141 = vmul.f32 %v432, %v998
        %v1142 = vmul.f32 %v521, %v998
        %v1143 = vmul.f32 %v435, %v1008
        %v1144 = vmul.f32 %v524, %v1008
        %v1145 = vmul.f32 %v437, %v1018
        %v1146 = vmul.f32 %v526, %v1018
        %v1147 = vmul.f32 %v440, %v1028
        %v1148 = vmul.f32 %v529, %v1028
        %v1149 = vmul.f32 %v442, %v1038
        %v1150 = vmul.f32 %v531, %v1038
        %v1151 = vmul.f32 %v445, %v1048
        %v1152 = vmul.f32 %v534, %v1048
        %v1153 = vmul.f32 %v447, %v1058
        %v1154 = vmul.f32 %v536, %v1058
        %v1155 = vmul.f32 %v450, %v1068
        %v1156 = vmul.f32 %v539, %v1068
        %v1157 = vmul.f32 %v452, %v1078
        %v1158 = vmul.f32 %v541, %v1078
        %v1159 = vmul.f32 %v455, %v1088
        %v1160 = vmul.f32 %v544, %v1088
        %v1161 = vmul.f32 %v457, %v1098
        %v1162 = vmul.f32 %v546, %v1098
        %v1163 = vld [vmem:[%s2] sm:$0x3]
        %v1164 = vunpack.c.l.bf16 %v1163
        %v1166 = vperm.slane %v1164, 0
        %v1167 = vperm.slane %v1164, 2
        %v1170 = vperm.slane %v1166, 0
        %v1171 = vperm.slane %v1167, 0
        %v1172 = vmul.f32 %v1099, %v1170
        %v1173 = vmul.f32 %v1100, %v1171
        %v1174 = vmul.f32 %v1101, %v1170
        %v1175 = vmul.f32 %v1102, %v1171
        %v1176 = vmul.f32 %v1103, %v1170
        %v1177 = vmul.f32 %v1104, %v1171
        %v1178 = vmul.f32 %v1105, %v1170
        %v1179 = vmul.f32 %v1106, %v1171
        %v1180 = vmul.f32 %v1107, %v1170
        %v1181 = vmul.f32 %v1108, %v1171
        %v1182 = vmul.f32 %v1109, %v1170
        %v1183 = vmul.f32 %v1110, %v1171
        %v1184 = vmul.f32 %v1111, %v1170
        %v1185 = vmul.f32 %v1112, %v1171
        %v1186 = vmul.f32 %v1113, %v1170
        %v1187 = vmul.f32 %v1114, %v1171
        %v1188 = vmul.f32 %v1115, %v1170
        %v1189 = vmul.f32 %v1116, %v1171
        %v1190 = vmul.f32 %v1117, %v1170
        %v1191 = vmul.f32 %v1118, %v1171
        %v1192 = vmul.f32 %v1119, %v1170
        %v1193 = vmul.f32 %v1120, %v1171
        %v1194 = vmul.f32 %v1121, %v1170
        %v1195 = vmul.f32 %v1122, %v1171
        %v1196 = vmul.f32 %v1123, %v1170
        %v1197 = vmul.f32 %v1124, %v1171
        %v1198 = vmul.f32 %v1125, %v1170
        %v1199 = vmul.f32 %v1126, %v1171
        %v1200 = vmul.f32 %v1127, %v1170
        %v1201 = vmul.f32 %v1128, %v1171
        %v1202 = vmul.f32 %v1129, %v1170
        %v1203 = vmul.f32 %v1130, %v1171
        %v1204 = vmul.f32 %v1131, %v1170
        %v1205 = vmul.f32 %v1132, %v1171
        %v1206 = vmul.f32 %v1133, %v1170
        %v1207 = vmul.f32 %v1134, %v1171
        %v1208 = vmul.f32 %v1135, %v1170
        %v1209 = vmul.f32 %v1136, %v1171
        %v1210 = vmul.f32 %v1137, %v1170
        %v1211 = vmul.f32 %v1138, %v1171
        %v1212 = vmul.f32 %v1139, %v1170
        %v1213 = vmul.f32 %v1140, %v1171
        %v1214 = vmul.f32 %v1141, %v1170
        %v1215 = vmul.f32 %v1142, %v1171
        %v1216 = vmul.f32 %v1143, %v1170
        %v1217 = vmul.f32 %v1144, %v1171
        %v1218 = vmul.f32 %v1145, %v1170
        %v1219 = vmul.f32 %v1146, %v1171
        %v1220 = vmul.f32 %v1147, %v1170
        %v1221 = vmul.f32 %v1148, %v1171
        %v1222 = vmul.f32 %v1149, %v1170
        %v1223 = vmul.f32 %v1150, %v1171
        %v1224 = vmul.f32 %v1151, %v1170
        %v1225 = vmul.f32 %v1152, %v1171
        %v1226 = vmul.f32 %v1153, %v1170
        %v1227 = vmul.f32 %v1154, %v1171
        %v1228 = vmul.f32 %v1155, %v1170
        %v1229 = vmul.f32 %v1156, %v1171
        %v1230 = vmul.f32 %v1157, %v1170
        %v1231 = vmul.f32 %v1158, %v1171
        %v1232 = vmul.f32 %v1159, %v1170
        %v1233 = vmul.f32 %v1160, %v1171
        %v1234 = vmul.f32 %v1161, %v1170
        %v1235 = vmul.f32 %v1162, %v1171
        %v1236 = vpack.c.bf16 %v1173, %v1172
        %v1237 = vpack.c.bf16 %v1175, %v1174
        %v1238 = vpack.c.bf16 %v1177, %v1176
        %v1239 = vpack.c.bf16 %v1179, %v1178
        %v1240 = vpack.c.bf16 %v1181, %v1180
        %v1241 = vpack.c.bf16 %v1183, %v1182
        %v1242 = vpack.c.bf16 %v1185, %v1184
        %v1243 = vpack.c.bf16 %v1187, %v1186
        %v1244 = vpack.c.bf16 %v1189, %v1188
        %v1245 = vpack.c.bf16 %v1191, %v1190
        %v1246 = vpack.c.bf16 %v1193, %v1192
        %v1247 = vpack.c.bf16 %v1195, %v1194
        %v1248 = vpack.c.bf16 %v1197, %v1196
        %v1249 = vpack.c.bf16 %v1199, %v1198
        %v1250 = vpack.c.bf16 %v1201, %v1200
        %v1251 = vpack.c.bf16 %v1203, %v1202
        %v1252 = vpack.c.bf16 %v1205, %v1204
        %v1253 = vpack.c.bf16 %v1207, %v1206
        %v1254 = vpack.c.bf16 %v1209, %v1208
        %v1255 = vpack.c.bf16 %v1211, %v1210
        %v1256 = vpack.c.bf16 %v1213, %v1212
        %v1257 = vpack.c.bf16 %v1215, %v1214
        %v1258 = vpack.c.bf16 %v1217, %v1216
        %v1259 = vpack.c.bf16 %v1219, %v1218
        %v1260 = vpack.c.bf16 %v1221, %v1220
        %v1261 = vpack.c.bf16 %v1223, %v1222
        %v1262 = vpack.c.bf16 %v1225, %v1224
        %v1263 = vpack.c.bf16 %v1227, %v1226
        %v1264 = vpack.c.bf16 %v1229, %v1228
        %v1265 = vpack.c.bf16 %v1231, %v1230
        %v1266 = vpack.c.bf16 %v1233, %v1232
        %v1267 = vpack.c.bf16 %v1235, %v1234
        %1268 = vst [vmem:[%s164] sm:$0xff] %v1236
        %1269 = vst [vmem:[%s164 + $0x8] sm:$0xff] %v1237
        %1270 = vst [vmem:[%s164 + $0x10] sm:$0xff] %v1238
        %1271 = vst [vmem:[%s164 + $0x18] sm:$0xff] %v1239
        %1272 = vst [vmem:[%s164 + $0x20] sm:$0xff] %v1240
        %1273 = vst [vmem:[%s164 + $0x28] sm:$0xff] %v1241
        %1274 = vst [vmem:[%s164 + $0x30] sm:$0xff] %v1242
        %1275 = vst [vmem:[%s164 + $0x38] sm:$0xff] %v1243
        %1276 = vst [vmem:[%s164 + $0x40] sm:$0xff] %v1244
        %1277 = vst [vmem:[%s164 + $0x48] sm:$0xff] %v1245
        %1278 = vst [vmem:[%s164 + $0x50] sm:$0xff] %v1246
        %1279 = vst [vmem:[%s164 + $0x58] sm:$0xff] %v1247
        %1280 = vst [vmem:[%s164 + $0x60] sm:$0xff] %v1248
        %1281 = vst [vmem:[%s164 + $0x68] sm:$0xff] %v1249
        %1282 = vst [vmem:[%s164 + $0x70] sm:$0xff] %v1250
        %1283 = vst [vmem:[%s164 + $0x78] sm:$0xff] %v1251
        %1284 = vst [vmem:[%s164 + $0x80] sm:$0xff] %v1252
        %1285 = vst [vmem:[%s164 + $0x88] sm:$0xff] %v1253
        %1286 = vst [vmem:[%s164 + $0x90] sm:$0xff] %v1254
        %1287 = vst [vmem:[%s164 + $0x98] sm:$0xff] %v1255
        %1288 = vst [vmem:[%s164 + $0xa0] sm:$0xff] %v1256
        %1289 = vst [vmem:[%s164 + $0xa8] sm:$0xff] %v1257
        %1290 = vst [vmem:[%s164 + $0xb0] sm:$0xff] %v1258
        %1291 = vst [vmem:[%s164 + $0xb8] sm:$0xff] %v1259
        %1292 = vst [vmem:[%s164 + $0xc0] sm:$0xff] %v1260
        %1293 = vst [vmem:[%s164 + $0xc8] sm:$0xff] %v1261
        %1294 = vst [vmem:[%s164 + $0xd0] sm:$0xff] %v1262
        %1295 = vst [vmem:[%s164 + $0xd8] sm:$0xff] %v1263
        %1296 = vst [vmem:[%s164 + $0xe0] sm:$0xff] %v1264
        %1297 = vst [vmem:[%s164 + $0xe8] sm:$0xff] %v1265
        %1298 = vst [vmem:[%s164 + $0xf0] sm:$0xff] %v1266
        %1299 = vst [vmem:[%s164 + $0xf8] sm:$0xff] %v1267
        %s1300 = sand.u32 %s93, 1
        %s1301 = scalar_lea.sflag [#allocation3], %s1300
        %s1302 = sand.u32 %s93, 1
        %s1303 = smul.addr %s1302, 256
        %s1304 = scalar_lea.vmem [#allocation2], %s1303
        // Predicated region
        $region33: #{tpu_custom_call.1} parent=31 // pred_check
          %p1305 = pneg %p103
        $region34: #{tpu_custom_call.1} parent=31 // pred_check_branch
          %1307 = sbr.rel (%p1305) target = $region36
        $region35: #{tpu_custom_call.1} parent=31 // pred_region
          %s1308 = smul.u32 32, %s17
          %1310 = vsyncadd %s1301, 0
          %s1311 = smul.addr %s1308, 2
          %s1312 = smul.addr %s1311, 4
          %s1313 = scalar_lea.hbm %s3, %s1312
          %s1314 = sshll.u32 %s1304, 4
          %s1315 = int_to_ptr.vmem [resolvable:$true] %s1314
          %s1316 = sshll.u32 %s1313, 4
          %s1317 = int_to_ptr.hbm [resolvable:$true] %s1316
          %1322 = dma.vmem_to_hbm [thread:$0]  %s1315, 4096, %s1317, %s1301, 128, 128, 8
        $region36: #{tpu_custom_call.1} parent=31 // pred_fallthru
          _
      $region32: #{tpu_custom_call.1} parent=5 // pred_fallthru
        _
      %p1323 = scmp.le.s32.totalorder 2, %s12
      // Predicated region
      $region37: #{tpu_custom_call.1} parent=5 // pred_check
        %p1324 = pneg %p1323
      $region38: #{tpu_custom_call.1} parent=5 // pred_check_branch
        %1326 = sbr.rel (%p1324) target = $region40
      $region39: #{tpu_custom_call.1} parent=5 // pred_region
        %s1327 = ssub.s32 %s12, 2
        // Predicated region
        $region41: #{tpu_custom_call.1} parent=39 // pred_check
          %p1328 = pneg %p109
        $region42: #{tpu_custom_call.1} parent=39 // pred_check_branch
          %1330 = sbr.rel (%p1328) target = $region44
        $region43: #{tpu_custom_call.1} parent=39 // pred_region
          %s1331 = sand.u32 %s94, 1
          %s1332 = scalar_lea.sflag [#allocation3], %s1331
          %s1333 = sand.u32 %s94, 1
          %s1334 = smul.addr %s1333, 256
          %s1335 = scalar_lea.vmem [#allocation2], %s1334
          %1337 = dma.done %s1332, 4096
        $region44: #{tpu_custom_call.1} parent=39 // pred_fallthru
          _
      $region40: #{tpu_custom_call.1} parent=5 // pred_fallthru
        _
    $region6: #{tpu_custom_call.1} parent=1 // loop_footer
      %s16 = sadd.s32 1, %s12
    $region7: #{tpu_custom_call.1} parent=1 // loop_footer_branch
      %11 = sbr.rel target = $region3
    $region8: #{tpu_custom_call.1} parent=1 // loop_exit
      _
    %1338 = vsyncpa [#allocation3], 1
    %s1339 = scalar_lea.sflag [#allocation3], 1
    %1340 = vsyncpa %s1339, 1

</llo_original>
